<compile_context>
chip_gen: v7x
topology: tpu7x:2x2x1
jax: 0.10.0
libtpu: 0.0.40
codegen_flags: <defaults>
</compile_context>

<pallas_src>
import math
import functools

import jax
import jax.numpy as jnp
from jax import lax
from jax.experimental import pallas as pl
from jax.experimental.pallas import tpu as pltpu


# ------------------------- generation-aware VMEM budget -------------------------

@functools.lru_cache(maxsize=1)
def _vmem_limit_bytes():
    # ~80% of physical VMEM: ~102 MiB on v5e/v6e (128 MiB), ~51 MiB on v7x (64 MiB).
    try:
        cap = int(pltpu.get_tpu_info().vmem_capacity_bytes)
        return max(32 * 1024 * 1024, int(cap * 0.8))
    except Exception:
        return 48 * 1024 * 1024  # safe everywhere


# ------------------------- tile-size helpers -------------------------

def _pick_lane_tile(dim, preferred):
    # Last (lane) dim of a block must be a multiple of 128 or the full dim.
    for t in (preferred, 1024, 512, 384, 256, 128):
        if t % 128 == 0 and t <= dim and dim % t == 0:
            return t
    return dim  # full-dim exception


def _pick_sublane_tile(dim, preferred):
    # Second-to-last (sublane) dim must be a multiple of 8 or the full dim.
    for t in (preferred, 1024, 512, 256, 128, 64, 32, 16, 8):
        if t <= dim and dim % t == 0:
            return t
    return dim  # full-dim exception


def _pick_head_group(num_heads, head_dim, target=512):
    # Largest divisor of num_heads with hg*head_dim <= target.
    best = 1
    for hg in range(1, num_heads + 1):
        if num_heads % hg == 0 and hg * head_dim <= target:
            best = hg
    return best


# ------------------------- tiled linear (x @ W) -------------------------

def _matmul_kernel(x_ref, w_ref, o_ref, acc_ref):
    @pl.when(pl.program_id(2) == 0)
    def _():
        acc_ref[...] = jnp.zeros_like(acc_ref)

    acc_ref[...] += jnp.dot(x_ref[...], w_ref[...],
                            preferred_element_type=jnp.float32)

    @pl.when(pl.program_id(2) == pl.num_programs(2) - 1)
    def _():
        o_ref[...] = acc_ref[...].astype(o_ref.dtype)


def pallas_matmul(x, w_t, *, block_m=512, block_n=512, block_k=1024):
    """x: (M, K), w_t: (K, N) (weight pre-transposed at init). Returns (M, N)."""
    M, K = x.shape
    K2, N = w_t.shape
    assert K == K2
    tm = _pick_sublane_tile(M, block_m)
    tk = _pick_lane_tile(K, block_k)
    tn = _pick_lane_tile(N, block_n)
    grid = (M // tm, N // tn, K // tk)
    itemsize = x.dtype.itemsize
    return pl.pallas_call(
        _matmul_kernel,
        out_shape=jax.ShapeDtypeStruct((M, N), x.dtype),
        grid_spec=pltpu.PrefetchScalarGridSpec(
            num_scalar_prefetch=0,
            grid=grid,
            in_specs=[
                pl.BlockSpec((tm, tk), lambda i, j, k: (i, k)),
                pl.BlockSpec((tk, tn), lambda i, j, k: (k, j)),
            ],
            out_specs=pl.BlockSpec((tm, tn), lambda i, j, k: (i, j)),
            scratch_shapes=[pltpu.VMEM((tm, tn), jnp.float32)],
        ),
        compiler_params=pltpu.CompilerParams(
            dimension_semantics=("parallel", "parallel", "arbitrary"),
            vmem_limit_bytes=_vmem_limit_bytes()),
        cost_estimate=pl.CostEstimate(
            flops=2 * M * N * K,
            transcendentals=0,
            bytes_accessed=(M * K + K * N + M * N) * itemsize),
    )(x, w_t)


# ------------- fused head-split + RoPE (+ scale fold) in one pass -------------

def _split_rope_kernel(qkv_ref, cos_ref, sin_ref, q_ref, k_ref, v_ref,
                       *, num_heads, num_kv_heads, head_dim, scale):
    # qkv_ref: (1, ts, op_size); cos/sin_ref: (1, ts, D)
    cos = cos_ref[0].astype(jnp.float32)
    sin = sin_ref[0].astype(jnp.float32)   # sign already folded (rotate_half)
    half = head_dim // 2

    def rope(x):
        xf = x.astype(jnp.float32)
        # rotate_half(x)*sin == concat(x2, x1)*sin_signed (sign folded in wrapper).
        xr = jnp.concatenate([xf[:, half:], xf[:, :half]], axis=-1)
        return xf * cos + xr * sin

    q_pos = num_heads * head_dim
    kv_pos = q_pos + num_kv_heads * head_dim
    for h in range(num_heads):
        x = qkv_ref[0, :, pl.ds(h * head_dim, head_dim)]
        q_ref[0, h] = (rope(x) * scale).astype(q_ref.dtype)
    for g in range(num_kv_heads):
        xk = qkv_ref[0, :, pl.ds(q_pos + g * head_dim, head_dim)]
        k_ref[0, g] = rope(xk).astype(k_ref.dtype)
        v_ref[0, g] = qkv_ref[0, :, pl.ds(kv_pos + g * head_dim, head_dim)
                              ].astype(v_ref.dtype)


def pallas_split_heads_rope(qkv, cos, sin_signed, num_heads, num_kv_heads,
                            head_dim, scale, *, block_s=256):
    """qkv: (B, S, op_size), cos/sin_signed: (B, S, D).

    Emits q: (B, H, S, D) (RoPE + softmax scale applied), k: (B, KVH, S, D)
    (RoPE applied), v: (B, KVH, S, D) — directly in attention layout, so there
    is no wrapper-side slice/transpose relayout and RoPE is applied once."""
    B, S, op = qkv.shape
    assert op == (num_heads + 2 * num_kv_heads) * head_dim
    ts = _pick_sublane_tile(S, block_s)
    grid = (B, S // ts)
    kernel = functools.partial(_split_rope_kernel, num_heads=num_heads,
                               num_kv_heads=num_kv_heads, head_dim=head_dim,
                               scale=scale)
    out_shape = (
        jax.ShapeDtypeStruct((B, num_heads, S, head_dim), qkv.dtype),
        jax.ShapeDtypeStruct((B, num_kv_heads, S, head_dim), qkv.dtype),
        jax.ShapeDtypeStruct((B, num_kv_heads, S, head_dim), qkv.dtype),
    )
    return pl.pallas_call(
        kernel,
        out_shape=out_shape,
        grid_spec=pltpu.PrefetchScalarGridSpec(
            num_scalar_prefetch=0,
            grid=grid,
            in_specs=[
                pl.BlockSpec((1, ts, op), lambda b, si: (b, si, 0)),
                pl.BlockSpec((1, ts, head_dim), lambda b, si: (b, si, 0)),
                pl.BlockSpec((1, ts, head_dim), lambda b, si: (b, si, 0)),
            ],
            out_specs=(
                pl.BlockSpec((1, num_heads, ts, head_dim),
                             lambda b, si: (b, 0, si, 0)),
                pl.BlockSpec((1, num_kv_heads, ts, head_dim),
                             lambda b, si: (b, 0, si, 0)),
                pl.BlockSpec((1, num_kv_heads, ts, head_dim),
                             lambda b, si: (b, 0, si, 0)),
            ),
        ),
        compiler_params=pltpu.CompilerParams(
            dimension_semantics=("parallel", "parallel"),
            vmem_limit_bytes=_vmem_limit_bytes()),
    )(qkv, cos, sin_signed)


# ----------------- flash causal GQA attention (RoPE/scale hoisted) -----------------

def _flash_attn_kernel(q_ref, k_ref, v_ref, o_ref, m_ref, l_ref, acc_ref,
                       *, tq, tk, n_rep, approx_recip):
    qi = pl.program_id(0)
    ki = pl.program_id(2)

    @pl.when(ki == 0)
    def _init():
        m_ref[...] = jnp.full_like(m_ref, -jnp.inf)
        l_ref[...] = jnp.zeros_like(l_ref)
        acc_ref[...] = jnp.zeros_like(acc_ref)

    q_start = qi * tq
    k_start = ki * tk

    def process(masked):
        k = k_ref[0, 0]                       # (tk, D)
        v = v_ref[0, 0]                       # (tk, D)
        if masked:
            row = q_start + lax.broadcasted_iota(jnp.int32, (tq, tk), 0)
            col = k_start + lax.broadcasted_iota(jnp.int32, (tq, tk), 1)
            keep = col <= row
        # Unrolled over the (small) GQA repeat factor: K/V are fetched once per
        # KV group and reused for every repeated query head.
        for h in range(n_rep):
            q = q_ref[0, h]                   # (tq, D); RoPE + scale pre-applied
            # q @ k^T without materializing a transposed K tile.
            s = lax.dot_general(q, k, (((1,), (1,)), ((), ())),
                                preferred_element_type=jnp.float32)  # (tq, tk)
            if masked:
                s = jnp.where(keep, s, -1e30)
            m_prev = m_ref[h]
            m_new = jnp.maximum(m_prev, jnp.max(s, axis=-1, keepdims=True))
            alpha = jnp.exp(m_prev - m_new)
            p = jnp.exp(s - m_new)
            l_ref[h] = alpha * l_ref[h] + jnp.sum(p, axis=-1, keepdims=True)
            acc_ref[h] = alpha * acc_ref[h] + jnp.dot(
                p.astype(v.dtype), v, preferred_element_type=jnp.float32)
            m_ref[h] = m_new

    # Fully visible KV block: no mask work at all.
    @pl.when(k_start + tk - 1 <= q_start)
    def _full_block():
        process(False)

    # Partially masked block: build the causal mask only here.  Blocks strictly
    # above the diagonal fall in neither branch -> no compute (and no new DMA,
    # thanks to the clamped KV index map).
    @pl.when(jnp.logical_and(k_start + tk - 1 > q_start,
                             k_start <= q_start + tq - 1))
    def _diag_block():
        process(True)

    @pl.when(ki == pl.num_programs(2) - 1)
    def _finalize():
        for h in range(n_rep):
            inv_l = pl.reciprocal(l_ref[h], approx=approx_recip)
            o_ref[0, h] = (acc_ref[h] * inv_l).astype(o_ref.dtype)


def flash_causal_gqa_attention(q, k, v, *, block_q=256, block_k=512,
                               approx_recip=True):
    """q: (B, H, S, D) (RoPE + scale pre-applied); k, v: (B, KVH, S, D).

    Grid (q_blocks, B*KVH, kv_blocks): KV axis last and 'arbitrary' (online
    softmax reduction); the GQA repeat axis is folded into the Q block."""
    B, H, S, D = q.shape
    KVH = k.shape[1]
    assert H % KVH == 0
    n_rep = H // KVH
    tq = _pick_sublane_tile(S, block_q)
    tk = _pick_sublane_tile(S, block_k)
    nq, nk = S // tq, S // tk
    # q-block axis first so the leading parallel axis has enough blocks for
    # 2-TC sharding on v7x even when B*KVH is small.
    grid = (nq, B * KVH, nk)

    def q_idx(qi, bg, ki):
        return (bg // KVH, bg % KVH, qi, 0)

    def kv_idx(qi, bg, ki):
        # Clamp skipped (above-diagonal) KV blocks onto the last useful block so
        # they re-use the already-resident tile and issue no new DMA.
        kmax = (qi * tq + tq - 1) // tk
        return (bg // KVH, bg % KVH, jnp.minimum(ki, kmax), 0)

    kernel = functools.partial(_flash_attn_kernel, tq=tq, tk=tk, n_rep=n_rep,
                               approx_recip=approx_recip)
    itemsize = q.dtype.itemsize
    return pl.pallas_call(
        kernel,
        out_shape=jax.ShapeDtypeStruct((B, H, S, D), q.dtype),
        grid_spec=pltpu.PrefetchScalarGridSpec(
            num_scalar_prefetch=0,
            grid=grid,
            in_specs=[
                pl.BlockSpec((1, n_rep, tq, D), q_idx),
                pl.BlockSpec((1, 1, tk, D), kv_idx),
                pl.BlockSpec((1, 1, tk, D), kv_idx),
            ],
            out_specs=pl.BlockSpec((1, n_rep, tq, D), q_idx),
            scratch_shapes=[
                pltpu.VMEM((n_rep, tq, 1), jnp.float32),   # running max m
                pltpu.VMEM((n_rep, tq, 1), jnp.float32),   # running denom l
                pltpu.VMEM((n_rep, tq, D), jnp.float32),   # output accumulator
            ],
        ),
        compiler_params=pltpu.CompilerParams(
            dimension_semantics=("parallel", "parallel", "arbitrary"),
            vmem_limit_bytes=_vmem_limit_bytes()),
        cost_estimate=pl.CostEstimate(
            flops=2 * B * H * S * S * D,                 # ~causal half of dense
            transcendentals=max(1, B * H * S * S // 2),
            bytes_accessed=(2 * B * H * S * D            # q read + o write
                            + B * KVH * S * D * (nq + 1)  # k+v (clamped reads)
                            ) * itemsize),
    )(q, k, v)


# --------------- head-contracted o_proj (reads (B,H,S,D) directly) ---------------

def _oproj_kernel(a_ref, w_ref, o_ref, acc_ref, *, hg):
    hi = pl.program_id(3)

    @pl.when(hi == 0)
    def _():
        acc_ref[...] = jnp.zeros_like(acc_ref)

    # a_ref: (1, hg, tm, D) attention tiles of hg heads; w_ref: (hg, D, tn).
    psum = jnp.dot(a_ref[0, 0], w_ref[0], preferred_element_type=jnp.float32)
    for j in range(1, hg):
        psum = psum + jnp.dot(a_ref[0, j], w_ref[j],
                              preferred_element_type=jnp.float32)
    acc_ref[...] += psum

    @pl.when(hi == pl.num_programs(3) - 1)
    def _():
        o_ref[0] = acc_ref[...].astype(o_ref.dtype)


def pallas_oproj(attn, w_heads, *, block_m=512, block_n=512):
    """attn: (B, H, S, D); w_heads: (H, D, hidden). Returns (B, S, hidden).

    Equivalent to attn.transpose(0,2,1,3).reshape(B,S,H*D) @ W_o.T, but reads
    the attention output directly in (B, H, S, D) layout and reduces over
    grouped heads on-chip (no HBM relayout of the attention output)."""
    B, H, S, D = attn.shape
    H2, D2, N = w_heads.shape
    assert H == H2 and D == D2
    tm = _pick_sublane_tile(S, block_m)
    tn = _pick_lane_tile(N, block_n)
    hg = _pick_head_group(H, D)
    grid = (B, S // tm, N // tn, H // hg)
    itemsize = attn.dtype.itemsize
    kernel = functools.partial(_oproj_kernel, hg=hg)
    return pl.pallas_call(
        kernel,
        out_shape=jax.ShapeDtypeStruct((B, S, N), attn.dtype),
        grid_spec=pltpu.PrefetchScalarGridSpec(
            num_scalar_prefetch=0,
            grid=grid,
            in_specs=[
                pl.BlockSpec((1, hg, tm, D), lambda b, mi, nj, hi: (b, hi, mi, 0)),
                pl.BlockSpec((hg, D, tn), lambda b, mi, nj, hi: (hi, 0, nj)),
            ],
            out_specs=pl.BlockSpec((1, tm, tn), lambda b, mi, nj, hi: (b, mi, nj)),
            scratch_shapes=[pltpu.VMEM((tm, tn), jnp.float32)],
        ),
        compiler_params=pltpu.CompilerParams(
            dimension_semantics=("parallel", "parallel", "parallel", "arbitrary"),
            vmem_limit_bytes=_vmem_limit_bytes()),
        cost_estimate=pl.CostEstimate(
            flops=2 * B * S * H * D * N,
            transcendentals=0,
            bytes_accessed=(B * H * S * D + H * D * N + B * S * N) * itemsize),
    )(attn, w_heads)


# ------------------------- RoPE glue (plain JAX) -------------------------

def rope_cos_sin(position_ids, dim, base, dtype):
    # Phi3RotaryEmbedding: cos/sin of shape (B, S, dim)
    inv_freq = 1.0 / (base ** (jnp.arange(0, dim, 2, dtype=jnp.float32) / dim))
    freqs = position_ids.astype(jnp.float32)[:, :, None] * inv_freq[None, None, :]
    emb = jnp.concatenate([freqs, freqs], axis=-1)
    return jnp.cos(emb).astype(dtype), jnp.sin(emb).astype(dtype)


def rotate_half(x):
    half = x.shape[-1] // 2
    return jnp.concatenate([-x[..., half:], x[..., :half]], axis=-1)


def apply_rotary_pos_emb(q, k, cos, sin):
    cos = cos[:, None, :, :]
    sin = sin[:, None, :, :]
    return q * cos + rotate_half(q) * sin, k * cos + rotate_half(k) * sin


# ------------------------- Module wrapper -------------------------

class Phi3FlashAttention2Pallas:
    def __init__(self, hidden_size, num_heads, num_kv_heads, rope_theta=10000.0,
                 dtype=jnp.bfloat16, approx_reciprocal=True, key=None):
        if key is None:
            key = jax.random.PRNGKey(0)
        self.hidden_size = hidden_size
        self.num_heads = num_heads
        self.num_kv_heads = num_kv_heads
        self.head_dim = hidden_size // num_heads
        self.rope_theta = rope_theta
        self.dtype = dtype
        self.approx_reciprocal = approx_reciprocal

        op_size = num_heads * self.head_dim + 2 * (num_kv_heads * self.head_dim)
        k1, k2 = jax.random.split(key)
        # torch nn.Linear weight layout (out, in), kept in f32 for the reference
        self.qkv_w = (jax.random.normal(k1, (op_size, hidden_size), jnp.float32)
                      * (1.0 / math.sqrt(hidden_size)))
        self.o_w = (jax.random.normal(k2, (hidden_size, num_heads * self.head_dim),
                                      jnp.float32)
                    * (1.0 / math.sqrt(num_heads * self.head_dim)))
        # Pre-arranged copies, built ONCE at init (no per-call w.T in HBM):
        self.qkv_w_t = self.qkv_w.T.astype(dtype)                       # (K, op_size)
        self.o_w_heads = self.o_w.T.reshape(                            # (H, D, hidden)
            num_heads, self.head_dim, hidden_size).astype(dtype)

    def __call__(self, hidden_states, position_ids):
        B, S, _ = hidden_states.shape
        nh, nkv, d = self.num_heads, self.num_kv_heads, self.head_dim
        x = hidden_states.astype(self.dtype)

        # 1) Fused QKV projection: tiled, pipelined matmul with f32 accumulation.
        qkv = pallas_matmul(x.reshape(B * S, self.hidden_size), self.qkv_w_t)
        qkv = qkv.reshape(B, S, -1)

        # 2) Head split + RoPE (+ softmax-scale folded into Q) in one Pallas
        #    pass, emitting Q/K/V directly in (B, heads, S, D) layout.  The sign
        #    of rotate_half is folded into sin so the kernel only needs a
        #    half-rotation.
        cos, sin = rope_cos_sin(position_ids, d, self.rope_theta, self.dtype)
        half = d // 2
        sign = jnp.concatenate([-jnp.ones((half,), cos.dtype),
                                jnp.ones((half,), cos.dtype)])
        sin_signed = sin * sign
        scale = 1.0 / math.sqrt(d)
        q, k, v = pallas_split_heads_rope(qkv, cos, sin_signed, nh, nkv, d, scale)

        # 3) Flash causal GQA attention (RoPE/scale hoisted out of the loop,
        #    GQA repeat folded into the Q block, clamped above-diagonal DMAs).
        attn = flash_causal_gqa_attention(q, k, v,
                                          approx_recip=self.approx_reciprocal)

        # 4) o_proj reads (B,H,S,D) directly, reducing over grouped heads.
        return pallas_oproj(attn, self.o_w_heads)                        # (B,S,hidden)


# ------------------------- reference (plain JAX, f32) -------------------------

def reference_forward(mod, hidden_states, position_ids):
    hp = lax.Precision.HIGHEST
    B, S, _ = hidden_states.shape
    nh, nkv, d = mod.num_heads, mod.num_kv_heads, mod.head_dim
    qkv = jnp.einsum("bsh,oh->bso", hidden_states, mod.qkv_w, precision=hp)
    q = qkv[..., :nh * d].reshape(B, S, nh, d).transpose(0, 2, 1, 3)
    k = qkv[..., nh * d:nh * d + nkv * d].reshape(B, S, nkv, d).transpose(0, 2, 1, 3)
    v = qkv[..., nh * d + nkv * d:].reshape(B, S, nkv, d).transpose(0, 2, 1, 3)
    cos, sin = rope_cos_sin(position_ids, d, mod.rope_theta, jnp.float32)
    q, k = apply_rotary_pos_emb(q, k, cos, sin)
    n_rep = nh // nkv
    k = jnp.repeat(k, n_rep, axis=1)
    v = jnp.repeat(v, n_rep, axis=1)
    s = jnp.einsum("bhqd,bhkd->bhqk", q, k, precision=hp) / math.sqrt(d)
    mask = jnp.tril(jnp.ones((S, S), bool))
    s = jnp.where(mask[None, None], s, -jnp.inf)
    p = jax.nn.softmax(s.astype(jnp.float32), axis=-1)
    o = jnp.einsum("bhqk,bhkd->bhqd", p, v, precision=hp)
    o = o.transpose(0, 2, 1, 3).reshape(B, S, nh * d)
    return jnp.einsum("bsf,of->bso", o, mod.o_w, precision=hp)


# ------------------------- main -------------------------

if __name__ == "__main__":
    B, S = 2, 8
    hidden_size, num_heads, num_kv_heads = 64, 4, 2

    key = jax.random.PRNGKey(0)
    k_x, k_p = jax.random.split(key)
    hidden_states = jax.random.normal(k_x, (B, S, hidden_size), jnp.float32)
    position_ids = jnp.broadcast_to(jnp.arange(S, dtype=jnp.int32)[None, :], (B, S))

    # f32 instance with exact reciprocal: tight check against the plain-JAX ref.
    mod_f32 = Phi3FlashAttention2Pallas(hidden_size, num_heads, num_kv_heads,
                                        rope_theta=10000.0, dtype=jnp.float32,
                                        approx_reciprocal=False, key=k_p)
    out_f32 = jax.block_until_ready(mod_f32(hidden_states, position_ids))
    ref = reference_forward(mod_f32, hidden_states, position_ids)
    assert out_f32.shape == (B, S, hidden_size)
    assert jnp.allclose(out_f32, ref, atol=2e-3, rtol=2e-3), (
        "f32 mismatch, max abs diff = %g" % float(jnp.max(jnp.abs(out_f32 - ref))))

    # bf16 operands (MXU-friendly) + approx reciprocal: loose sanity check
    # against the f32 kernel output.
    mod_bf16 = Phi3FlashAttention2Pallas(hidden_size, num_heads, num_kv_heads,
                                         rope_theta=10000.0, dtype=jnp.bfloat16,
                                         approx_reciprocal=True, key=k_p)
    out_bf16 = jax.block_until_ready(mod_bf16(hidden_states, position_ids))
    out_bf16_f32 = out_bf16.astype(jnp.float32)
    assert out_bf16.shape == (B, S, hidden_size)
    assert bool(jnp.all(jnp.isfinite(out_bf16_f32)))
    assert jnp.allclose(out_bf16_f32, out_f32, atol=0.2, rtol=0.2), (
        "bf16 mismatch, max abs diff = %g"
        % float(jnp.max(jnp.abs(out_bf16_f32 - out_f32))))

    print("KERNEL_OK")
</pallas_src>

<mosaic_0001>
module attributes {stable_mosaic.version = 11 : i64} {
  func.func @_matmul_kernel(%arg0: i32, %arg1: i32, %arg2: i32, %arg3: memref<16x64xf32, #tpu.memory_space<vmem>>, %arg4: memref<64x128xf32, #tpu.memory_space<vmem>>, %arg5: memref<16x128xf32, #tpu.memory_space<vmem>>, %arg6: memref<16x128xf32, #tpu.memory_space<vmem>>) attributes {dimension_semantics = [#tpu.dimension_semantics<parallel>, #tpu.dimension_semantics<parallel>, #tpu.dimension_semantics<arbitrary>], iteration_bounds = array<i64: 1, 1, 1>, scalar_prefetch = 0 : i64, scratch_operands = 1 : i64, tpu.core_type = #tpu.core_type<tc>, window_params = [{transform_indices = @transform_0, window_bounds = array<i64: 16, 64>}, {transform_indices = @transform_1, window_bounds = array<i64: 64, 128>}, {transform_indices = @transform_2, window_bounds = array<i64: 16, 128>}]} {
    %c0_i32 = arith.constant 0 : i32
    %0 = arith.cmpi eq, %arg2, %c0_i32 : i32
    %1 = arith.extui %0 : i1 to i32
    %c0_i32_0 = arith.constant 0 : i32
    %2 = arith.cmpi ne, %1, %c0_i32_0 : i32
    scf.if %2 {
      %cst_10 = arith.constant 0.000000e+00 : f32
      %12 = vector.broadcast %cst_10 : f32 to vector<16x128xf32>
      %c0_11 = arith.constant 0 : index
      %c0_12 = arith.constant 0 : index
      %13 = vector.load %arg6[%c0_11, %c0_12] : memref<16x128xf32, #tpu.memory_space<vmem>>, vector<16x128xf32>
      tpu.vector_store %arg6[%c0_11, %c0_12], %12 {strides = array<i32>} : memref<16x128xf32, #tpu.memory_space<vmem>>, vector<16x128xf32>,
    } else {
    }
    %c0 = arith.constant 0 : index
    %c0_1 = arith.constant 0 : index
    %3 = vector.load %arg6[%c0, %c0_1] : memref<16x128xf32, #tpu.memory_space<vmem>>, vector<16x128xf32>
    %c0_2 = arith.constant 0 : index
    %c0_3 = arith.constant 0 : index
    %4 = vector.load %arg3[%c0_2, %c0_3] : memref<16x64xf32, #tpu.memory_space<vmem>>, vector<16x64xf32>
    %c0_4 = arith.constant 0 : index
    %c0_5 = arith.constant 0 : index
    %5 = vector.load %arg4[%c0_4, %c0_5] : memref<64x128xf32, #tpu.memory_space<vmem>>, vector<64x128xf32>
    %cst = arith.constant dense<0.000000e+00> : vector<16x128xf32>
    %6 = tpu.matmul %4, %5, %cst {dimension_numbers = #tpu.dot_dimension_numbers<[1], [0], [0], [1], [0, 0, 1, 1], [], []>} : vector<16x64xf32>, vector<64x128xf32>, vector<16x128xf32> -> vector<16x128xf32>
    %7 = arith.addf %3, %6 : vector<16x128xf32>
    %c0_6 = arith.constant 0 : index
    %c0_7 = arith.constant 0 : index
    %8 = vector.load %arg6[%c0_6, %c0_7] : memref<16x128xf32, #tpu.memory_space<vmem>>, vector<16x128xf32>
    tpu.vector_store %arg6[%c0_6, %c0_7], %7 {strides = array<i32>} : memref<16x128xf32, #tpu.memory_space<vmem>>, vector<16x128xf32>,
    %c0_i32_8 = arith.constant 0 : i32
    %9 = arith.cmpi eq, %arg2, %c0_i32_8 : i32
    %10 = arith.extui %9 : i1 to i32
    %c0_i32_9 = arith.constant 0 : i32
    %11 = arith.cmpi ne, %10, %c0_i32_9 : i32
    scf.if %11 {
      %c0_10 = arith.constant 0 : index
      %c0_11 = arith.constant 0 : index
      %12 = vector.load %arg6[%c0_10, %c0_11] : memref<16x128xf32, #tpu.memory_space<vmem>>, vector<16x128xf32>
      %c0_12 = arith.constant 0 : index
      %c0_13 = arith.constant 0 : index
      %13 = vector.load %arg5[%c0_12, %c0_13] : memref<16x128xf32, #tpu.memory_space<vmem>>, vector<16x128xf32>
      tpu.vector_store %arg5[%c0_12, %c0_13], %12 {strides = array<i32>} : memref<16x128xf32, #tpu.memory_space<vmem>>, vector<16x128xf32>,
    } else {
    }
    return
  }
  func.func @transform_0(%arg0: i32, %arg1: i32, %arg2: i32) -> (i32, i32) {
    %c0_i32 = arith.constant 0 : i32
    return %arg0, %arg2 : i32, i32
  }
  func.func @transform_1(%arg0: i32, %arg1: i32, %arg2: i32) -> (i32, i32) {
    %c0_i32 = arith.constant 0 : i32
    return %arg2, %arg1 : i32, i32
  }
  func.func @transform_2(%arg0: i32, %arg1: i32, %arg2: i32) -> (i32, i32) {
    %c0_i32 = arith.constant 0 : i32
    return %arg0, %arg1 : i32, i32
  }
}

</mosaic_0001>

<llo_original>
// kernel: tpu_custom_call.1
$region0: #{tpu_custom_call.1}
  #allocation0 [shape = 'u32[]', space=smem, size = 0x4, offset = 0x4, fixed_abs, tag = 'smem constant byte address 0x4 - core index']
  #allocation1 [shape = 'u32[144,128]{1,0:T(1,128)}', space=vmem, size = 0x12000, scoped, tag = 'internal scratch']
  #allocation2 [shape = 'f32[16,128]{1,0:T(8,128)}', space=vmem, size = 0x2000, scoped, tag = 'scratch operand']
  %s0 = inlined_call_operand.hbm [shape: f32[16,64], index: 0, kind: input, shape index: {}]
  %s1 = inlined_call_operand.hbm [shape: f32[64,128], index: 1, kind: input, shape index: {}]
  %s2 = inlined_call_operand.hbm [shape: f32[16,128], index: 2, kind: output, shape index: {}]
  %s3 = sld [smem:[#allocation0]]
  $region34: #{tpu_custom_call.1} parent=0
    _
  %s5 = ssub.s32 1, %s3
  %s6 = scalar_select 0, %s5, %s3
  $region1: #{tpu_custom_call.1} parent=0
    #allocation3 [shape = 'u8[8192]{0}', space=vmem, size = 0x2000, scoped, tag = 'input window, operand 0, single buffered']
    #allocation4 [shape = 's32[1]{0}', space=sflag, size = 0x4, scoped, tag = 'scoped memory for tpu_custom_call.1']
    #allocation5 [shape = 's32[1]{0}', space=sflag, size = 0x4, scoped, tag = 'scoped memory for tpu_custom_call.1']
    #allocation6 [shape = 'u8[32768]{0}', space=vmem, size = 0x8000, scoped, tag = 'input window, operand 1, single buffered']
    #allocation7 [shape = 's32[1]{0}', space=sflag, size = 0x4, scoped, tag = 'scoped memory for tpu_custom_call.1']
    #allocation8 [shape = 'u8[8192]{0}', space=vmem, size = 0x2000, scoped, tag = 'output window, operand 0, single buffered']
    %7 = vsyncpa [#allocation4], 0
    %8 = vsyncpa [#allocation7], 0
    %9 = vsyncpa [#allocation5], 0
    // Predicated region
    $region2: #{tpu_custom_call.1} parent=1 // pred_check
      _
    $region3: #{tpu_custom_call.1} parent=1 // pred_check_branch
      %11 = sbr.rel (0) target = $region5
    $region4: #{tpu_custom_call.1} parent=1 // pred_region
      %s13 = ssub.s32 256, 256
      %14 = vsyncadd [#allocation4], %s13
      %s15 = sshll.u32 [#allocation3], 4
      %s16 = int_to_ptr.vmem [resolvable:$true] %s15
      %21 = dma.hbm_to_vmem [thread:$0]  %s0, 256, %s16, [#allocation4], 128, 128, 8
    $region5: #{tpu_custom_call.1} parent=1 // pred_fallthru
      _
    // Predicated region
    $region6: #{tpu_custom_call.1} parent=1 // pred_check
      _
    $region7: #{tpu_custom_call.1} parent=1 // pred_check_branch
      %23 = sbr.rel (0) target = $region9
    $region8: #{tpu_custom_call.1} parent=1 // pred_region
      %s25 = ssub.s32 1024, 1024
      %26 = vsyncadd [#allocation7], %s25
      %s27 = sshll.u32 [#allocation6], 4
      %s28 = int_to_ptr.vmem [resolvable:$true] %s27
      %33 = dma.hbm_to_vmem [thread:$0]  %s1, 1024, %s28, [#allocation7], 128, 128, 8
    $region9: #{tpu_custom_call.1} parent=1 // pred_fallthru
      _
    // Predicated region
    $region10: #{tpu_custom_call.1} parent=1 // pred_check
      _
    $region11: #{tpu_custom_call.1} parent=1 // pred_check_branch
      %35 = sbr.rel (0) target = $region13
    $region12: #{tpu_custom_call.1} parent=1 // pred_region
      %36 = dma.done [#allocation4], 256
    $region13: #{tpu_custom_call.1} parent=1 // pred_fallthru
      _
    // Predicated region
    $region14: #{tpu_custom_call.1} parent=1 // pred_check
      _
    $region15: #{tpu_custom_call.1} parent=1 // pred_check_branch
      %38 = sbr.rel (0) target = $region17
    $region16: #{tpu_custom_call.1} parent=1 // pred_region
      %39 = dma.done [#allocation7], 1024
    $region17: #{tpu_custom_call.1} parent=1 // pred_fallthru
      _
    %p40 = scmp.eq.s32.totalorder 0, 0
    // Predicated region
    $region18: #{tpu_custom_call.1} parent=1 // pred_check
      %p41 = pneg %p40
    $region19: #{tpu_custom_call.1} parent=1 // pred_check_branch
      %43 = sbr.rel (%p41) target = $region21
    $region20: #{tpu_custom_call.1} parent=1 // pred_region
      %44 = vst [vmem:[#allocation2] sm:$0xff] 0.0
      %45 = vst [vmem:[#allocation2 + $0x8] sm:$0xff] 0.0
    $region21: #{tpu_custom_call.1} parent=1 // pred_fallthru
      _
    %v46 = vld [vmem:[#allocation2] sm:$0xff]
    %v47 = vld [vmem:[#allocation2 + $0x8] sm:$0xff]
    %v48 = vld [vmem:[#allocation3] sm:$0xff]
    %v49 = vld [vmem:[#allocation3 + $0x8] sm:$0xff]
    %v50 = vld [vmem:[#allocation6] sm:$0xff]
    %v51 = vld [vmem:[#allocation6 + $0x8] sm:$0xff]
    %v52 = vld [vmem:[#allocation6 + $0x10] sm:$0xff]
    %v53 = vld [vmem:[#allocation6 + $0x18] sm:$0xff]
    %v54 = vld [vmem:[#allocation6 + $0x20] sm:$0xff]
    %v55 = vld [vmem:[#allocation6 + $0x28] sm:$0xff]
    %v56 = vld [vmem:[#allocation6 + $0x30] sm:$0xff]
    %v57 = vld [vmem:[#allocation6 + $0x38] sm:$0xff]
    %vm58 = vcmask 523264
    %v60 = vsel %vm58, %v48, 0
    %v63 = vsel %vm58, %v49, 0
    %65 = vmatprep.subr.mxu0 0.0
    %66 = vmatpush1.msra.mxu0 %v50
    %67 = vmatprep.subr.mxu0 0.0
    %68 = vmatpush1.msra.mxu0 %v51
    %69 = vmatprep.subr.mxu0 0.0
    %70 = vmatpush1.msra.mxu0 %v52
    %71 = vmatprep.subr.mxu0 0.0
    %72 = vmatpush1.msra.mxu0 %v53
    %73 = vmatprep.subr.mxu0 0.0
    %74 = vmatpush1.msra.mxu0 %v54
    %75 = vmatprep.subr.mxu0 0.0
    %76 = vmatpush1.msra.mxu0 %v55
    %77 = vmatprep.subr.mxu0 0.0
    %78 = vmatpush1.msra.mxu0 %v56
    %79 = vmatprep.subr.mxu0 0.0
    %80 = vmatpush1.msra.mxu0 %v57
    %81 = vmatprep.subr.mxu0 0.0
    %82 = vmatpush1.msra.mxu0 0.0
    %83 = vmatprep.subr.mxu0 0.0
    %84 = vmatpush1.msra.mxu0 0.0
    %85 = vmatprep.subr.mxu0 0.0
    %86 = vmatpush1.msra.mxu0 0.0
    %87 = vmatprep.subr.mxu0 0.0
    %88 = vmatpush1.msra.mxu0 0.0
    %89 = vmatprep.subr.mxu0 0.0
    %90 = vmatpush1.msra.mxu0 0.0
    %91 = vmatprep.subr.mxu0 0.0
    %92 = vmatpush1.msra.mxu0 0.0
    %93 = vmatprep.subr.mxu0 0.0
    %94 = vmatpush1.msra.mxu0 0.0
    %95 = vmatprep.subr.mxu0 0.0
    %96 = vmatpush1.msra.mxu0 0.0
    %97 = vmatprep.subr.mxu0 0.0
    %98 = vmatpush1.msra.mxu0 0.0
    %99 = vmatprep.subr.mxu0 0.0
    %100 = vmatpush1.msra.mxu0 0.0
    %101 = vmatprep.subr.mxu0 0.0
    %102 = vmatpush1.msra.mxu0 0.0
    %103 = vmatprep.subr.mxu0 0.0
    %104 = vmatpush1.msra.mxu0 0.0
    %105 = vmatprep.subr.mxu0 0.0
    %106 = vmatpush1.msra.mxu0 0.0
    %107 = vmatprep.subr.mxu0 0.0
    %108 = vmatpush1.msra.mxu0 0.0
    %109 = vmatprep.subr.mxu0 0.0
    %110 = vmatpush1.msra.mxu0 0.0
    %111 = vmatprep.subr.mxu0 0.0
    %112 = vmatpush1.msra.mxu0 0.0
    %113 = vmatprep.subr.mxu0 0.0
    %114 = vmatpush1.msra.mxu0 0.0
    %115 = vmatprep.subr.mxu0 0.0
    %116 = vmatpush1.msra.mxu0 0.0
    %117 = vmatprep.subr.mxu0 0.0
    %118 = vmatpush1.msra.mxu0 0.0
    %119 = vmatprep.subr.mxu0 0.0
    %120 = vmatpush1.msra.mxu0 0.0
    %121 = vmatprep.subr.mxu0 0.0
    %122 = vmatpush1.msra.mxu0 0.0
    %123 = vmatprep.subr.mxu0 0.0
    %124 = vmatpush1.msra.mxu0 0.0
    %125 = vmatprep.subr.mxu0 0.0
    %126 = vmatpush1.msra.mxu0 0.0
    %127 = vmatprep.subr.mxu0 0.0
    %128 = vmatpush1.msra.mxu0 0.0
    %129 = vmatprep.mubr.f32.mxu0 0.0
    %130 = vmatmul.mubr.f32.gmra.mrb[0].mxu0 %v60
    %v131 = vpop.f32.mrb[0].mxu0
    %v132 = vadd.f32 0.0, %v131
    %v133 = vpop.f32.mrb[0].mxu0
    %134 = vmatprep.mubr.f32.mxu0 0.0
    %135 = vmatmul.mubr.f32.gmra.mrb[0].mxu0 %v63
    %v136 = vpop.f32.mrb[0].mxu0
    %v137 = vadd.f32 0.0, %v136
    %v138 = vpop.f32.mrb[0].mxu0
    %139 = vdwg.mxu0
    %v140 = vadd.f32 %v46, %v132
    %v141 = vadd.f32 %v47, %v137
    %142 = vst [vmem:[#allocation2] sm:$0xff] %v140
    %143 = vst [vmem:[#allocation2 + $0x8] sm:$0xff] %v141
    // Predicated region
    $region22: #{tpu_custom_call.1} parent=1 // pred_check
      %p144 = pneg %p40
    $region23: #{tpu_custom_call.1} parent=1 // pred_check_branch
      %146 = sbr.rel (%p144) target = $region25
    $region24: #{tpu_custom_call.1} parent=1 // pred_region
      %v147 = vld [vmem:[#allocation2] sm:$0xff]
      %v148 = vld [vmem:[#allocation2 + $0x8] sm:$0xff]
      %149 = vst [vmem:[#allocation8] sm:$0xff] %v147
      %150 = vst [vmem:[#allocation8 + $0x8] sm:$0xff] %v148
    $region25: #{tpu_custom_call.1} parent=1 // pred_fallthru
      _
    // Predicated region
    $region26: #{tpu_custom_call.1} parent=1 // pred_check
      _
    $region27: #{tpu_custom_call.1} parent=1 // pred_check_branch
      %152 = sbr.rel (0) target = $region29
    $region28: #{tpu_custom_call.1} parent=1 // pred_region
      %s154 = ssub.s32 256, 256
      %155 = vsyncadd [#allocation5], %s154
      %s156 = sshll.u32 [#allocation8], 4
      %s157 = int_to_ptr.vmem [resolvable:$true] %s156
      %162 = dma.vmem_to_hbm [thread:$0]  %s157, 256, %s2, [#allocation5], 128, 128, 8
    $region29: #{tpu_custom_call.1} parent=1 // pred_fallthru
      _
    // Predicated region
    $region30: #{tpu_custom_call.1} parent=1 // pred_check
      _
    $region31: #{tpu_custom_call.1} parent=1 // pred_check_branch
      %164 = sbr.rel (0) target = $region33
    $region32: #{tpu_custom_call.1} parent=1 // pred_region
      %165 = dma.done [#allocation5], 256
    $region33: #{tpu_custom_call.1} parent=1 // pred_fallthru
      _
    %166 = vsyncpa [#allocation4], 1
    %167 = vsyncpa [#allocation7], 1
    %168 = vsyncpa [#allocation5], 1

</llo_original>
